<compile_context>
chip_gen: v7x
topology: tpu7x:2x2x1
jax: 0.10.0
libtpu: 0.0.40
codegen_flags: <defaults>
</compile_context>

<pallas_src>
import jax
import jax.numpy as jnp
import numpy as np
from jax.experimental import pallas as pl
from jax.experimental.pallas import tpu as pltpu

_LANES = 128


def _soft_dice_kernel(logits_ref, targets_ref, out_ref,
                      inter_acc, m1_acc, m2_acc):
    k = pl.program_id(0)

    @pl.when(k == 0)
    def _init():
        inter_acc[...] = jnp.zeros_like(inter_acc)
        m1_acc[...] = jnp.zeros_like(m1_acc)
        m2_acc[...] = jnp.zeros_like(m2_acc)

    # Block is (N, tr, 128): fully dense (8,128) tiles per sample.
    probs = jax.nn.sigmoid(logits_ref[...].astype(jnp.float32))   # (N, tr, 128)
    tgt = targets_ref[...].astype(jnp.float32)                    # (N, tr, 128)

    # Lane-dense accumulation: reduce only over the sublane-tiled row axis,
    # keep the 128-lane axis. Cross-lane reduce is deferred to finalize.
    inter_acc[...] += jnp.sum(probs * tgt, axis=1)                # (N, 128)
    m1_acc[...] += jnp.sum(probs, axis=1)                         # (N, 128)
    m2_acc[...] += jnp.sum(tgt, axis=1)                           # (N, 128)

    @pl.when(k == pl.num_programs(0) - 1)
    def _finalize():
        smooth = 1.0
        num = inter_acc.shape[0]
        inter = jnp.sum(inter_acc[...], axis=1, keepdims=True)    # (N, 1)
        s1 = jnp.sum(m1_acc[...], axis=1, keepdims=True)          # (N, 1)
        s2 = jnp.sum(m2_acc[...], axis=1, keepdims=True)          # (N, 1)
        score = 2.0 * (inter + smooth) / (s1 + s2 + smooth)       # (N, 1)
        loss = 1.0 - jnp.sum(score) / num
        out_ref[...] = jnp.full((1, 1), loss, dtype=out_ref.dtype)


def soft_dice_loss(logits, targets, *, vmem_budget_bytes=16 * 1024 * 1024):
    """Pallas implementation of SoftDiceLoss.forward (returns scalar f32).

    Inputs may be f32 or bf16; accumulation is always f32 (matches the
    PyTorch reference numerics to within dtype rounding of the inputs).
    """
    num = logits.shape[0]
    m1 = logits.reshape(num, -1)       # equivalent of .view(num, -1)
    m2 = targets.reshape(num, -1)
    F = m1.shape[1]

    itemsize = max(jnp.dtype(m1.dtype).itemsize, jnp.dtype(m2.dtype).itemsize)

    # Rows of 128 lanes per sample.
    R = pl.cdiv(F, _LANES)

    # Size the feature tile from a VMEM budget:
    #   2 inputs x 2 pipeline buffers x (num, tr, 128) x itemsize  <= budget
    bytes_per_row = 2 * 2 * num * _LANES * itemsize
    tr = max(8, (vmem_budget_bytes // bytes_per_row) // 8 * 8)
    r_ceil8 = ((R + 7) // 8) * 8
    tr = min(tr, r_ceil8)

    # Pad the feature axis up to a whole number of tiles. Logits are padded
    # with a large negative value (sigmoid -> 0) so m1 is not inflated;
    # targets are padded with 0.
    R_pad = ((R + tr - 1) // tr) * tr
    F_pad = R_pad * _LANES
    if F_pad != F:
        m1 = jnp.pad(m1, ((0, 0), (0, F_pad - F)), constant_values=-1e30)
        m2 = jnp.pad(m2, ((0, 0), (0, F_pad - F)), constant_values=0)

    m1 = m1.reshape(num, R_pad, _LANES)
    m2 = m2.reshape(num, R_pad, _LANES)

    grid = (R_pad // tr,)

    # Scoped-VMEM limit: double-buffered inputs + accumulators + headroom,
    # clamped so it is valid on every generation (v7x physical VMEM = 64 MiB).
    block_ws = 2 * 2 * num * tr * _LANES * itemsize
    acc_bytes = 3 * num * _LANES * 4
    vmem_limit = int(min(max(block_ws + acc_bytes + (2 << 20), 8 << 20),
                         48 << 20))

    out = pl.pallas_call(
        _soft_dice_kernel,
        out_shape=jax.ShapeDtypeStruct((1, 1), jnp.float32),
        grid_spec=pltpu.PrefetchScalarGridSpec(
            num_scalar_prefetch=0,
            grid=grid,
            in_specs=[
                pl.BlockSpec((num, tr, _LANES), lambda k: (0, k, 0)),
                pl.BlockSpec((num, tr, _LANES), lambda k: (0, k, 0)),
            ],
            out_specs=pl.BlockSpec((1, 1), lambda k: (0, 0)),
            scratch_shapes=[
                pltpu.VMEM((num, _LANES), jnp.float32),
                pltpu.VMEM((num, _LANES), jnp.float32),
                pltpu.VMEM((num, _LANES), jnp.float32),
            ],
        ),
        compiler_params=pltpu.CompilerParams(
            dimension_semantics=("arbitrary",),
            vmem_limit_bytes=vmem_limit,
        ),
    )(m1, m2)
    return out[0, 0]


def _soft_dice_loss_ref(logits, targets):
    """Pure-JAX reference mirroring the PyTorch module."""
    num = targets.shape[0]
    smooth = 1.0
    probs = jax.nn.sigmoid(logits.astype(jnp.float32))
    m1 = probs.reshape(num, -1)
    m2 = targets.astype(jnp.float32).reshape(num, -1)
    intersection = m1 * m2
    score = 2.0 * (intersection.sum(1) + smooth) / (m1.sum(1) + m2.sum(1) + smooth)
    return 1.0 - score.sum() / num


if __name__ == "__main__":
    key = jax.random.PRNGKey(0)
    k1, k2 = jax.random.split(key)

    # Shapes implied by typical segmentation usage: NCHW logits + binary targets.
    N, C, H, W = 2, 4, 16, 16
    logits = jax.random.normal(k1, (N, C, H, W), dtype=jnp.float32)
    targets = (jax.random.uniform(k2, (N, C, H, W)) > 0.5).astype(jnp.float32)

    loss = soft_dice_loss(logits, targets)
    loss = jax.block_until_ready(loss)

    ref = jax.block_until_ready(_soft_dice_loss_ref(logits, targets))
    assert np.allclose(np.asarray(loss), np.asarray(ref), rtol=1e-5, atol=1e-5), (
        float(loss), float(ref))

    print("KERNEL_OK")
</pallas_src>

<mosaic_0001>
module attributes {stable_mosaic.version = 11 : i64} {
  func.func @_soft_dice_kernel(%arg0: i32, %arg1: memref<2x8x128xf32, #tpu.memory_space<vmem>>, %arg2: memref<2x8x128xf32, #tpu.memory_space<vmem>>, %arg3: memref<1x1xf32, #tpu.memory_space<vmem>>, %arg4: memref<2x128xf32, #tpu.memory_space<vmem>>, %arg5: memref<2x128xf32, #tpu.memory_space<vmem>>, %arg6: memref<2x128xf32, #tpu.memory_space<vmem>>) attributes {dimension_semantics = [#tpu.dimension_semantics<arbitrary>], iteration_bounds = array<i64: 1>, scalar_prefetch = 0 : i64, scratch_operands = 3 : i64, tpu.core_type = #tpu.core_type<tc>, window_params = [{transform_indices = @transform_0, window_bounds = array<i64: 2, 8, 128>}, {transform_indices = @transform_1, window_bounds = array<i64: 2, 8, 128>}, {pipeline_mode = #tpu.pipeline_mode<synchronous>, transform_indices = @transform_2, window_bounds = array<i64: 1, 1>}]} {
    %c0_i32 = arith.constant 0 : i32
    %0 = arith.cmpi eq, %arg0, %c0_i32 : i32
    %1 = arith.extui %0 : i1 to i32
    %c0_i32_0 = arith.constant 0 : i32
    %2 = arith.cmpi ne, %1, %c0_i32_0 : i32
    scf.if %2 {
      %cst_23 = arith.constant 0.000000e+00 : f32
      %26 = vector.broadcast %cst_23 : f32 to vector<2x128xf32>
      %c0_24 = arith.constant 0 : index
      %c0_25 = arith.constant 0 : index
      %27 = vector.load %arg4[%c0_24, %c0_25] : memref<2x128xf32, #tpu.memory_space<vmem>>, vector<2x128xf32>
      tpu.vector_store %arg4[%c0_24, %c0_25], %26 {strides = array<i32>} : memref<2x128xf32, #tpu.memory_space<vmem>>, vector<2x128xf32>,
      %cst_26 = arith.constant 0.000000e+00 : f32
      %28 = vector.broadcast %cst_26 : f32 to vector<2x128xf32>
      %c0_27 = arith.constant 0 : index
      %c0_28 = arith.constant 0 : index
      %29 = vector.load %arg5[%c0_27, %c0_28] : memref<2x128xf32, #tpu.memory_space<vmem>>, vector<2x128xf32>
      tpu.vector_store %arg5[%c0_27, %c0_28], %28 {strides = array<i32>} : memref<2x128xf32, #tpu.memory_space<vmem>>, vector<2x128xf32>,
      %cst_29 = arith.constant 0.000000e+00 : f32
      %30 = vector.broadcast %cst_29 : f32 to vector<2x128xf32>
      %c0_30 = arith.constant 0 : index
      %c0_31 = arith.constant 0 : index
      %31 = vector.load %arg6[%c0_30, %c0_31] : memref<2x128xf32, #tpu.memory_space<vmem>>, vector<2x128xf32>
      tpu.vector_store %arg6[%c0_30, %c0_31], %30 {strides = array<i32>} : memref<2x128xf32, #tpu.memory_space<vmem>>, vector<2x128xf32>,
    } else {
    }
    %c0 = arith.constant 0 : index
    %c0_1 = arith.constant 0 : index
    %c0_2 = arith.constant 0 : index
    %3 = vector.load %arg1[%c0, %c0_1, %c0_2] : memref<2x8x128xf32, #tpu.memory_space<vmem>>, vector<2x8x128xf32>
    %4 = arith.negf %3 : vector<2x8x128xf32>
    %5 = math.exp %4 : vector<2x8x128xf32>
    %cst = arith.constant 1.000000e+00 : f32
    %6 = vector.broadcast %cst : f32 to vector<2x8x128xf32>
    %7 = arith.addf %6, %5 : vector<2x8x128xf32>
    %8 = arith.divf %6, %7 : vector<2x8x128xf32>
    %c0_3 = arith.constant 0 : index
    %c0_4 = arith.constant 0 : index
    %c0_5 = arith.constant 0 : index
    %9 = vector.load %arg2[%c0_3, %c0_4, %c0_5] : memref<2x8x128xf32, #tpu.memory_space<vmem>>, vector<2x8x128xf32>
    %c0_6 = arith.constant 0 : index
    %c0_7 = arith.constant 0 : index
    %10 = vector.load %arg4[%c0_6, %c0_7] : memref<2x128xf32, #tpu.memory_space<vmem>>, vector<2x128xf32>
    %11 = arith.mulf %8, %9 : vector<2x8x128xf32>
    %cst_8 = arith.constant dense<0.000000e+00> : vector<2x128xf32>
    %12 = vector.multi_reduction <add>, %11, %cst_8 [1] : vector<2x8x128xf32> to vector<2x128xf32>
    %13 = arith.addf %10, %12 : vector<2x128xf32>
    %c0_9 = arith.constant 0 : index
    %c0_10 = arith.constant 0 : index
    %14 = vector.load %arg4[%c0_9, %c0_10] : memref<2x128xf32, #tpu.memory_space<vmem>>, vector<2x128xf32>
    tpu.vector_store %arg4[%c0_9, %c0_10], %13 {strides = array<i32>} : memref<2x128xf32, #tpu.memory_space<vmem>>, vector<2x128xf32>,
    %c0_11 = arith.constant 0 : index
    %c0_12 = arith.constant 0 : index
    %15 = vector.load %arg5[%c0_11, %c0_12] : memref<2x128xf32, #tpu.memory_space<vmem>>, vector<2x128xf32>
    %cst_13 = arith.constant dense<0.000000e+00> : vector<2x128xf32>
    %16 = vector.multi_reduction <add>, %8, %cst_13 [1] : vector<2x8x128xf32> to vector<2x128xf32>
    %17 = arith.addf %15, %16 : vector<2x128xf32>
    %c0_14 = arith.constant 0 : index
    %c0_15 = arith.constant 0 : index
    %18 = vector.load %arg5[%c0_14, %c0_15] : memref<2x128xf32, #tpu.memory_space<vmem>>, vector<2x128xf32>
    tpu.vector_store %arg5[%c0_14, %c0_15], %17 {strides = array<i32>} : memref<2x128xf32, #tpu.memory_space<vmem>>, vector<2x128xf32>,
    %c0_16 = arith.constant 0 : index
    %c0_17 = arith.constant 0 : index
    %19 = vector.load %arg6[%c0_16, %c0_17] : memref<2x128xf32, #tpu.memory_space<vmem>>, vector<2x128xf32>
    %cst_18 = arith.constant dense<0.000000e+00> : vector<2x128xf32>
    %20 = vector.multi_reduction <add>, %9, %cst_18 [1] : vector<2x8x128xf32> to vector<2x128xf32>
    %21 = arith.addf %19, %20 : vector<2x128xf32>
    %c0_19 = arith.constant 0 : index
    %c0_20 = arith.constant 0 : index
    %22 = vector.load %arg6[%c0_19, %c0_20] : memref<2x128xf32, #tpu.memory_space<vmem>>, vector<2x128xf32>
    tpu.vector_store %arg6[%c0_19, %c0_20], %21 {strides = array<i32>} : memref<2x128xf32, #tpu.memory_space<vmem>>, vector<2x128xf32>,
    %c0_i32_21 = arith.constant 0 : i32
    %23 = arith.cmpi eq, %arg0, %c0_i32_21 : i32
    %24 = arith.extui %23 : i1 to i32
    %c0_i32_22 = arith.constant 0 : i32
    %25 = arith.cmpi ne, %24, %c0_i32_22 : i32
    scf.if %25 {
      %c0_23 = arith.constant 0 : index
      %c0_24 = arith.constant 0 : index
      %26 = vector.load %arg4[%c0_23, %c0_24] : memref<2x128xf32, #tpu.memory_space<vmem>>, vector<2x128xf32>
      %cst_25 = arith.constant dense<0.000000e+00> : vector<2xf32>
      %27 = vector.multi_reduction <add>, %26, %cst_25 [1] : vector<2x128xf32> to vector<2xf32>
      %28 = vector.shape_cast %27 : vector<2xf32> to vector<2x1xf32>
      %c0_26 = arith.constant 0 : index
      %c0_27 = arith.constant 0 : index
      %29 = vector.load %arg5[%c0_26, %c0_27] : memref<2x128xf32, #tpu.memory_space<vmem>>, vector<2x128xf32>
      %cst_28 = arith.constant dense<0.000000e+00> : vector<2xf32>
      %30 = vector.multi_reduction <add>, %29, %cst_28 [1] : vector<2x128xf32> to vector<2xf32>
      %31 = vector.shape_cast %30 : vector<2xf32> to vector<2x1xf32>
      %c0_29 = arith.constant 0 : index
      %c0_30 = arith.constant 0 : index
      %32 = vector.load %arg6[%c0_29, %c0_30] : memref<2x128xf32, #tpu.memory_space<vmem>>, vector<2x128xf32>
      %cst_31 = arith.constant dense<0.000000e+00> : vector<2xf32>
      %33 = vector.multi_reduction <add>, %32, %cst_31 [1] : vector<2x128xf32> to vector<2xf32>
      %34 = vector.shape_cast %33 : vector<2xf32> to vector<2x1xf32>
      %cst_32 = arith.constant 1.000000e+00 : f32
      %35 = vector.broadcast %cst_32 : f32 to vector<2x1xf32>
      %36 = arith.addf %28, %35 : vector<2x1xf32>
      %cst_33 = arith.constant 2.000000e+00 : f32
      %37 = vector.broadcast %cst_33 : f32 to vector<2x1xf32>
      %38 = arith.mulf %37, %36 : vector<2x1xf32>
      %39 = arith.addf %31, %34 : vector<2x1xf32>
      %cst_34 = arith.constant 1.000000e+00 : f32
      %40 = vector.broadcast %cst_34 : f32 to vector<2x1xf32>
      %41 = arith.addf %39, %40 : vector<2x1xf32>
      %42 = arith.divf %38, %41 : vector<2x1xf32>
      %43 = vector.shape_cast %42 : vector<2x1xf32> to vector<1x2x1xf32>
      %cst_35 = arith.constant dense<0.000000e+00> : vector<1xf32>
      %44 = vector.multi_reduction <add>, %43, %cst_35 [1, 2] : vector<1x2x1xf32> to vector<1xf32>
      %45 = vector.shape_cast %44 : vector<1xf32> to vector<1x1x1xf32>
      %46 = vector.extract %45[0, 0, 0] : f32 from vector<1x1x1xf32>
      %cst_36 = arith.constant 2.000000e+00 : f32
      %47 = arith.divf %46, %cst_36 : f32
      %cst_37 = arith.constant 1.000000e+00 : f32
      %48 = arith.subf %cst_37, %47 : f32
      %49 = vector.broadcast %48 : f32 to vector<1x1xf32>
      %c0_38 = arith.constant 0 : index
      %c0_39 = arith.constant 0 : index
      %50 = vector.load %arg3[%c0_38, %c0_39] : memref<1x1xf32, #tpu.memory_space<vmem>>, vector<1x1xf32>
      tpu.vector_store %arg3[%c0_38, %c0_39], %49 {strides = array<i32>} : memref<1x1xf32, #tpu.memory_space<vmem>>, vector<1x1xf32>,
    } else {
    }
    return
  }
  func.func @transform_0(%arg0: i32) -> (i32, i32, i32) {
    %c0_i32 = arith.constant 0 : i32
    %c0_i32_0 = arith.constant 0 : i32
    %c0_i32_1 = arith.constant 0 : i32
    return %c0_i32, %arg0, %c0_i32_0 : i32, i32, i32
  }
  func.func @transform_1(%arg0: i32) -> (i32, i32, i32) {
    %c0_i32 = arith.constant 0 : i32
    %c0_i32_0 = arith.constant 0 : i32
    %c0_i32_1 = arith.constant 0 : i32
    return %c0_i32, %arg0, %c0_i32_0 : i32, i32, i32
  }
  func.func @transform_2(%arg0: i32) -> (i32, i32) {
    %c0_i32 = arith.constant 0 : i32
    %c0_i32_0 = arith.constant 0 : i32
    %c0_i32_1 = arith.constant 0 : i32
    return %c0_i32, %c0_i32_0 : i32, i32
  }
}

</mosaic_0001>

<llo_original>
// kernel: tpu_custom_call.1
$region0: #{tpu_custom_call.1}
  #allocation0 [shape = 'u32[]', space=smem, size = 0x4, offset = 0x4, fixed_abs, tag = 'smem constant byte address 0x4 - core index']
  #allocation1 [shape = 'u32[144,128]{1,0:T(1,128)}', space=vmem, size = 0x12000, scoped, tag = 'internal scratch']
  #allocation2 [shape = 'f32[2,128]{1,0:T(2,128)}', space=vmem, size = 0x400, scoped, tag = 'scratch operand']
  #allocation3 [shape = 'f32[2,128]{1,0:T(2,128)}', space=vmem, size = 0x400, scoped, tag = 'scratch operand']
  #allocation4 [shape = 'f32[2,128]{1,0:T(2,128)}', space=vmem, size = 0x400, scoped, tag = 'scratch operand']
  %s0 = inlined_call_operand.hbm [shape: f32[2,8,128], index: 0, kind: input, shape index: {}]
  %s1 = inlined_call_operand.hbm [shape: f32[2,8,128], index: 1, kind: input, shape index: {}]
  %s2 = inlined_call_operand.hbm [shape: f32[1,1], index: 2, kind: output, shape index: {}]
  %s3 = sld [smem:[#allocation0]]
  $region34: #{tpu_custom_call.1} parent=0
    _
  %s5 = ssub.s32 1, %s3
  %s6 = scalar_select 0, %s5, %s3
  $region1: #{tpu_custom_call.1} parent=0
    #allocation5 [shape = 'u8[8192]{0}', space=vmem, size = 0x2000, scoped, tag = 'input window, operand 0, single buffered']
    #allocation6 [shape = 's32[1]{0}', space=sflag, size = 0x4, scoped, tag = 'scoped memory for tpu_custom_call.1']
    #allocation7 [shape = 's32[1]{0}', space=sflag, size = 0x4, scoped, tag = 'scoped memory for tpu_custom_call.1']
    #allocation8 [shape = 'u8[8192]{0}', space=vmem, size = 0x2000, scoped, tag = 'input window, operand 1, single buffered']
    #allocation9 [shape = 's32[1]{0}', space=sflag, size = 0x4, scoped, tag = 'scoped memory for tpu_custom_call.1']
    #allocation10 [shape = 'u8[512]{0}', space=vmem, size = 0x400, scoped, tag = 'output window, operand 0, single buffered']
    %7 = vsyncpa [#allocation6], 0
    %8 = vsyncpa [#allocation9], 0
    %9 = vsyncpa [#allocation7], 0
    // Predicated region
    $region2: #{tpu_custom_call.1} parent=1 // pred_check
      _
    $region3: #{tpu_custom_call.1} parent=1 // pred_check_branch
      %11 = sbr.rel (0) target = $region5
    $region4: #{tpu_custom_call.1} parent=1 // pred_region
      %s13 = ssub.s32 256, 256
      %14 = vsyncadd [#allocation6], %s13
      %s15 = sshll.u32 [#allocation5], 4
      %s16 = int_to_ptr.vmem [resolvable:$true] %s15
      %21 = dma.hbm_to_vmem [thread:$0]  %s0, 256, %s16, [#allocation6], 128, 128, 8
    $region5: #{tpu_custom_call.1} parent=1 // pred_fallthru
      _
    // Predicated region
    $region6: #{tpu_custom_call.1} parent=1 // pred_check
      _
    $region7: #{tpu_custom_call.1} parent=1 // pred_check_branch
      %23 = sbr.rel (0) target = $region9
    $region8: #{tpu_custom_call.1} parent=1 // pred_region
      %s25 = ssub.s32 256, 256
      %26 = vsyncadd [#allocation9], %s25
      %s27 = sshll.u32 [#allocation8], 4
      %s28 = int_to_ptr.vmem [resolvable:$true] %s27
      %33 = dma.hbm_to_vmem [thread:$0]  %s1, 256, %s28, [#allocation9], 128, 128, 8
    $region9: #{tpu_custom_call.1} parent=1 // pred_fallthru
      _
    // Predicated region
    $region10: #{tpu_custom_call.1} parent=1 // pred_check
      _
    $region11: #{tpu_custom_call.1} parent=1 // pred_check_branch
      %35 = sbr.rel (0) target = $region13
    $region12: #{tpu_custom_call.1} parent=1 // pred_region
      %36 = dma.done [#allocation6], 256
    $region13: #{tpu_custom_call.1} parent=1 // pred_fallthru
      _
    // Predicated region
    $region14: #{tpu_custom_call.1} parent=1 // pred_check
      _
    $region15: #{tpu_custom_call.1} parent=1 // pred_check_branch
      %38 = sbr.rel (0) target = $region17
    $region16: #{tpu_custom_call.1} parent=1 // pred_region
      %39 = dma.done [#allocation9], 256
    $region17: #{tpu_custom_call.1} parent=1 // pred_fallthru
      _
    %p40 = scmp.eq.s32.totalorder 0, 0
    // Predicated region
    $region18: #{tpu_custom_call.1} parent=1 // pred_check
      %p41 = pneg %p40
    $region19: #{tpu_custom_call.1} parent=1 // pred_check_branch
      %43 = sbr.rel (%p41) target = $region21
    $region20: #{tpu_custom_call.1} parent=1 // pred_region
      %44 = vst [vmem:[#allocation2] sm:$0x3] 0.0
      %45 = vst [vmem:[#allocation3] sm:$0x3] 0.0
      %46 = vst [vmem:[#allocation4] sm:$0x3] 0.0
    $region21: #{tpu_custom_call.1} parent=1 // pred_fallthru
      _
    %v47 = vld [vmem:[#allocation5] sm:$0xff]
    %v48 = vld [vmem:[#allocation5 + $0x8] sm:$0xff]
    %v49 = vxor.u32 %v47, 2147483648
    %v50 = vxor.u32 %v48, 2147483648
    %v51 = vmul.f32 %v49, 1.442695
    %v52 = vpow.pop %v51
    %v53 = vmul.f32 %v50, 1.442695
    %v54 = vpow.pop %v53
    %v55 = vadd.f32 %v52, 1.0
    %v56 = vadd.f32 %v54, 1.0
    %v57 = vrcp.pop %v55
    %v58 = vmul.f32 1.0, %v57
    %v59 = vrcp.pop %v56
    %v60 = vmul.f32 1.0, %v59
    %v61 = vld [vmem:[#allocation8] sm:$0xff]
    %v62 = vld [vmem:[#allocation8 + $0x8] sm:$0xff]
    %v63 = vld [vmem:[#allocation2] sm:$0x3]
    %v64 = vmul.f32 %v58, %v61
    %v65 = vmul.f32 %v60, %v62
    %v66 = vrot.slane %v64, 4
    %v67 = vadd.f32 %v64, %v66
    %v68 = vrot.slane %v67, 2
    %v69 = vadd.f32 %v67, %v68
    %v70 = vrot.slane %v69, 1
    %v71 = vadd.f32 %v69, %v70
    %v72 = vrot.slane %v65, 4
    %v73 = vadd.f32 %v65, %v72
    %v74 = vrot.slane %v73, 2
    %v75 = vadd.f32 %v73, %v74
    %v76 = vrot.slane %v75, 1
    %v77 = vadd.f32 %v75, %v76
    %vm80 = vcmask 1041409
    %v81 = vsel %vm80, %v77, %v71
    %v83 = vadd.f32 %v63, %v81
    %84 = vst [vmem:[#allocation2] sm:$0x3] %v83
    %v85 = vld [vmem:[#allocation3] sm:$0x3]
    %v86 = vrot.slane %v58, 4
    %v87 = vadd.f32 %v58, %v86
    %v88 = vrot.slane %v87, 2
    %v89 = vadd.f32 %v87, %v88
    %v90 = vrot.slane %v89, 1
    %v91 = vadd.f32 %v89, %v90
    %v92 = vrot.slane %v60, 4
    %v93 = vadd.f32 %v60, %v92
    %v94 = vrot.slane %v93, 2
    %v95 = vadd.f32 %v93, %v94
    %v96 = vrot.slane %v95, 1
    %v97 = vadd.f32 %v95, %v96
    %v100 = vsel %vm80, %v97, %v91
    %v102 = vadd.f32 %v85, %v100
    %103 = vst [vmem:[#allocation3] sm:$0x3] %v102
    %v104 = vld [vmem:[#allocation4] sm:$0x3]
    %v105 = vrot.slane %v61, 4
    %v106 = vadd.f32 %v61, %v105
    %v107 = vrot.slane %v106, 2
    %v108 = vadd.f32 %v106, %v107
    %v109 = vrot.slane %v108, 1
    %v110 = vadd.f32 %v108, %v109
    %v111 = vrot.slane %v62, 4
    %v112 = vadd.f32 %v62, %v111
    %v113 = vrot.slane %v112, 2
    %v114 = vadd.f32 %v112, %v113
    %v115 = vrot.slane %v114, 1
    %v116 = vadd.f32 %v114, %v115
    %v119 = vsel %vm80, %v116, %v110
    %v121 = vadd.f32 %v104, %v119
    %122 = vst [vmem:[#allocation4] sm:$0x3] %v121
    // Predicated region
    $region22: #{tpu_custom_call.1} parent=1 // pred_check
      %p123 = pneg %p40
    $region23: #{tpu_custom_call.1} parent=1 // pred_check_branch
      %125 = sbr.rel (%p123) target = $region25
    $region24: #{tpu_custom_call.1} parent=1 // pred_region
      %v126 = vld [vmem:[#allocation2] sm:$0x3]
      %vm127 = vcmask 1041408
      %v128 = vsel %vm127, %v126, 0.0
      %129 = vadd.xlane.f32.xlu0 %v128
      %v130 = vpop.xlane.xlu0 %129
      %v131 = vld [vmem:[#allocation3] sm:$0x3]
      %v132 = vsel %vm127, %v131, 0.0
      %133 = vadd.xlane.f32.xlu0 %v132
      %v134 = vpop.xlane.xlu0 %133
      %v135 = vld [vmem:[#allocation4] sm:$0x3]
      %v136 = vsel %vm127, %v135, 0.0
      %137 = vadd.xlane.f32.xlu0 %v136
      %v138 = vpop.xlane.xlu0 %137
      %v139 = vadd.f32 %v130, 1.0
      %v140 = vmul.f32 %v139, 2.0
      %v141 = vadd.f32 %v134, %v138
      %v142 = vadd.f32 %v141, 1.0
      %v143 = vrcp.pop %v142
      %v144 = vmul.f32 %v140, %v143
      %vm145 = vcmask 1024
      %v146 = vsel %vm145, %v144, 0.0
      %147 = vadd.xlane.f32.xlu0 %v146
      %v148 = vpop.xlane.xlu0 %147
      %v149 = vrot.slane %v148, 4
      %v150 = vadd.f32 %v148, %v149
      %v151 = vrot.slane %v150, 2
      %v152 = vadd.f32 %v150, %v151
      %v153 = vrot.slane %v152, 1
      %v154 = vadd.f32 %v152, %v153
      %s155 = vtos %v154
      %v156 = vrcp.pop 2.0
      %s157 = vtos %v156
      %s158 = smul.f32 %s155, %s157
      %s159 = ssub.f32 1.0, %s158
      %v160 = vstv %s159
      %vm161 = vcmask 0
      %162 = vst.msk [vmem:[#allocation10] sm:$0x1] %vm161, %v160
    $region25: #{tpu_custom_call.1} parent=1 // pred_fallthru
      _
    // Predicated region
    $region26: #{tpu_custom_call.1} parent=1 // pred_check
      _
    $region27: #{tpu_custom_call.1} parent=1 // pred_check_branch
      %164 = sbr.rel (0) target = $region29
    $region28: #{tpu_custom_call.1} parent=1 // pred_region
      %s166 = ssub.s32 16, 16
      %167 = vsyncadd [#allocation7], %s166
      %s169 = sshll.u32 [#allocation10], 4
      %s170 = int_to_ptr.vmem [resolvable:$true] %s169
      %172 = dma.vmem_to_hbm [thread:$0]  %s170, 16, %s2, [#allocation7]
    $region29: #{tpu_custom_call.1} parent=1 // pred_fallthru
      _
    // Predicated region
    $region30: #{tpu_custom_call.1} parent=1 // pred_check
      _
    $region31: #{tpu_custom_call.1} parent=1 // pred_check_branch
      %174 = sbr.rel (0) target = $region33
    $region32: #{tpu_custom_call.1} parent=1 // pred_region
      %175 = dma.done [#allocation7], 16
    $region33: #{tpu_custom_call.1} parent=1 // pred_fallthru
      _
    %176 = vsyncpa [#allocation6], 1
    %177 = vsyncpa [#allocation9], 1
    %178 = vsyncpa [#allocation7], 1

</llo_original>
